<compile_context>
chip_gen: v7x
topology: tpu7x:2x2x1
jax: 0.10.0
libtpu: 0.0.40
codegen_flags: <defaults>
</compile_context>

<pallas_src>
import functools

import jax
import jax.numpy as jnp
from jax.experimental import pallas as pl
from jax.experimental.pallas import tpu as pltpu


# ------------------------- schedule setup (glue) ---------------------------
def make_alpha_bars(n_steps=200, min_beta=1e-4, max_beta=0.02):
    betas = jnp.linspace(min_beta, max_beta, n_steps, dtype=jnp.float32)
    alphas = 1.0 - betas
    alpha_bars = jnp.cumprod(alphas)          # prod(alphas[:i+1]) per step
    return betas, alphas, alpha_bars


# ------------------------------ Pallas kernel ------------------------------
def ddpm_noising_kernel(ab_ref, x_ref, e_ref, out_ref, *, compute_dtype):
    # ab_ref  : VMEM (TILE_N, 1) f32   per-row alpha_bar
    # x_ref   : VMEM (TILE_N, TILE_F)  flattened x0 tile
    # e_ref   : VMEM (TILE_N, TILE_F)  flattened noise tile
    # out_ref : VMEM (TILE_N, TILE_F)
    a_bar = ab_ref[...]                                   # (TILE_N, 1) f32
    s_ab = jnp.sqrt(a_bar).astype(compute_dtype)          # EUP, free slot
    s_1m = jnp.sqrt(1.0 - a_bar).astype(compute_dtype)
    x = x_ref[...].astype(compute_dtype)
    e = e_ref[...].astype(compute_dtype)
    out_ref[...] = (s_ab * x + s_1m * e).astype(out_ref.dtype)


# ----------------------------- tiling helpers ------------------------------
def _physical_vmem_bytes():
    try:
        return int(pltpu.get_tpu_info().vmem_capacity_bytes)
    except Exception:
        return 64 << 20                                   # conservative (v7x)


def _compute_dtype(in_dtype):
    if jnp.dtype(in_dtype) == jnp.dtype(jnp.bfloat16):
        try:
            kind = jax.devices()[0].device_kind.lower()
        except Exception:
            kind = ""
        # v5e has no bf16 VPU -> keep f32 compute there.
        if "v5" in kind:
            return jnp.float32
        return jnp.bfloat16
    return jnp.float32


def _choose_tiles(n, feat, itemsize, target_bytes):
    """Pick (row_tile, feat_tile): feat tile is a multiple-of-128 divisor of
    feat (or the full feat), row tile is a multiple of 8 (or the full n)."""
    if feat % 128 != 0 or 8 * feat * itemsize <= target_bytes:
        bf = feat                               # full-feat block (always legal)
    else:
        budget_f = max(128, ((target_bytes // (8 * itemsize)) // 128) * 128)
        f_units = feat // 128
        bf = 128
        for d in range(f_units, 0, -1):         # largest divisor within budget
            if f_units % d == 0 and d * 128 <= budget_f:
                bf = d * 128
                break
    rows = max(1, target_bytes // (bf * itemsize))
    if rows >= n:
        tn = n
    else:
        tn = min(n, max(8, (rows // 8) * 8))
    return tn, bf


def _ensure_multi_block(n, feat, tn, bf, itemsize, min_split_bytes=2 << 20):
    """Force >= 2 grid blocks when there is enough data (v7x has 2 TCs)."""
    total = n * feat * itemsize
    n_blocks = (-(-n // tn)) * (-(-feat // bf))
    if total < min_split_bytes or n_blocks >= 2:
        return tn, bf
    if n >= 16:
        tn = max(8, ((n // 2) // 8) * 8)
    elif feat % 256 == 0:
        f_units = feat // 128
        for d in range(f_units // 2, 0, -1):    # <= feat/2, still divides feat
            if f_units % d == 0:
                bf = d * 128
                break
    return tn, bf


# ------------------------------- forward -----------------------------------
def ddpm_forward(x0, t, eta, alpha_bars, *, target_bytes=4 << 20):
    """Pallas implementation of MyDDPM.forward (noising step)."""
    n, c, h, w = x0.shape
    feat = c * h * w
    itemsize = jnp.dtype(x0.dtype).itemsize

    # Only the tiny per-sample gather stays outside; sqrt's happen in-kernel.
    a_bar = alpha_bars[t].astype(jnp.float32)                # (n,)

    # Lane-dense flattened view; pack rows when n < 8 so sublanes are full.
    pack = 8 if (n < 8 and feat % (8 * 128) == 0) else 1
    n_p, feat_p = n * pack, feat // pack
    x2 = x0.reshape(n_p, feat_p)
    e2 = eta.reshape(n_p, feat_p)
    ab2 = jnp.repeat(a_bar, pack).reshape(n_p, 1) if pack > 1 \
        else a_bar.reshape(n_p, 1)

    tile_n, tile_f = _choose_tiles(n_p, feat_p, itemsize, target_bytes)
    tile_n, tile_f = _ensure_multi_block(n_p, feat_p, tile_n, tile_f, itemsize)
    grid = (pl.cdiv(n_p, tile_n), pl.cdiv(feat_p, tile_f))

    # 2 inputs + 1 output, double-buffered ~= 6x tile; keep headroom but stay
    # within half the physical VMEM of the smallest target (v7x: 64 MiB).
    tile_bytes = tile_n * tile_f * itemsize
    vmem_limit = int(min(_physical_vmem_bytes() // 2,
                         max(16 << 20, 8 * tile_bytes)))

    img_spec = pl.BlockSpec((tile_n, tile_f), lambda i, j: (i, j))
    scale_spec = pl.BlockSpec((tile_n, 1), lambda i, j: (i, 0))

    kernel = functools.partial(ddpm_noising_kernel,
                               compute_dtype=_compute_dtype(x0.dtype))

    # TODO(synk): could alias eta -> output via input_output_aliases if the
    # caller donates it; kept non-aliasing to preserve caller semantics.
    out2 = pl.pallas_call(
        kernel,
        out_shape=jax.ShapeDtypeStruct((n_p, feat_p), x0.dtype),
        grid=grid,
        in_specs=[scale_spec, img_spec, img_spec],
        out_specs=img_spec,
        compiler_params=pltpu.CompilerParams(
            dimension_semantics=("parallel", "parallel"),
            vmem_limit_bytes=vmem_limit),
        cost_estimate=pl.CostEstimate(
            flops=3 * n * feat,
            transcendentals=2 * n,
            bytes_accessed=3 * n * feat * itemsize + n_p * 4),
    )(ab2, x2, e2)

    return out2.reshape(n, c, h, w)


# --------------------------------- main ------------------------------------
if __name__ == "__main__":
    n_steps = 200
    N, C, H, W = 2, 4, 16, 16

    key = jax.random.PRNGKey(0)
    k_x, k_t, k_e = jax.random.split(key, 3)

    x0 = jax.random.normal(k_x, (N, C, H, W), dtype=jnp.float32)
    t = jax.random.randint(k_t, (N,), 0, n_steps, dtype=jnp.int32)
    eta = jax.random.normal(k_e, (N, C, H, W), dtype=jnp.float32)

    _, _, alpha_bars = make_alpha_bars(n_steps=n_steps)

    noisy = ddpm_forward(x0, t, eta, alpha_bars)
    noisy = jax.block_until_ready(noisy)

    # pure-JAX reference check
    a_bar = alpha_bars[t]
    ref = (jnp.sqrt(a_bar).reshape(N, 1, 1, 1) * x0
           + jnp.sqrt(1.0 - a_bar).reshape(N, 1, 1, 1) * eta)
    assert jnp.allclose(noisy, ref, atol=1e-5, rtol=1e-5), "mismatch vs reference"

    # TODO(synk): MyDDPM.backward (the denoiser `network`) is an external
    # sub-module and is not part of this forward kernel.
    print("KERNEL_OK")
</pallas_src>

<mosaic_0001>
module attributes {stable_mosaic.version = 11 : i64} {
  func.func @ddpm_noising_kernel(%arg0: i32, %arg1: i32, %arg2: memref<16x1xf32, #tpu.memory_space<vmem>>, %arg3: memref<16x128xf32, #tpu.memory_space<vmem>>, %arg4: memref<16x128xf32, #tpu.memory_space<vmem>>, %arg5: memref<16x128xf32, #tpu.memory_space<vmem>>) attributes {dimension_semantics = [#tpu.dimension_semantics<parallel>, #tpu.dimension_semantics<parallel>], iteration_bounds = array<i64: 1, 1>, scalar_prefetch = 0 : i64, scratch_operands = 0 : i64, tpu.core_type = #tpu.core_type<tc>, window_params = [{transform_indices = @transform_0, window_bounds = array<i64: 16, 1>}, {transform_indices = @transform_1, window_bounds = array<i64: 16, 128>}, {transform_indices = @transform_2, window_bounds = array<i64: 16, 128>}, {transform_indices = @transform_3, window_bounds = array<i64: 16, 128>}]} {
    %c0 = arith.constant 0 : index
    %c0_0 = arith.constant 0 : index
    %0 = vector.load %arg2[%c0, %c0_0] : memref<16x1xf32, #tpu.memory_space<vmem>>, vector<16x1xf32>
    %1 = math.sqrt %0 : vector<16x1xf32>
    %cst = arith.constant 1.000000e+00 : f32
    %2 = vector.broadcast %cst : f32 to vector<16x1xf32>
    %3 = arith.subf %2, %0 : vector<16x1xf32>
    %4 = math.sqrt %3 : vector<16x1xf32>
    %c0_1 = arith.constant 0 : index
    %c0_2 = arith.constant 0 : index
    %5 = vector.load %arg3[%c0_1, %c0_2] : memref<16x128xf32, #tpu.memory_space<vmem>>, vector<16x128xf32>
    %c0_3 = arith.constant 0 : index
    %c0_4 = arith.constant 0 : index
    %6 = vector.load %arg4[%c0_3, %c0_4] : memref<16x128xf32, #tpu.memory_space<vmem>>, vector<16x128xf32>
    %7 = vector.broadcast %1 : vector<16x1xf32> to vector<16x128xf32>
    %8 = arith.mulf %7, %5 : vector<16x128xf32>
    %9 = vector.broadcast %4 : vector<16x1xf32> to vector<16x128xf32>
    %10 = arith.mulf %9, %6 : vector<16x128xf32>
    %11 = arith.addf %8, %10 : vector<16x128xf32>
    %c0_5 = arith.constant 0 : index
    %c0_6 = arith.constant 0 : index
    %12 = vector.load %arg5[%c0_5, %c0_6] : memref<16x128xf32, #tpu.memory_space<vmem>>, vector<16x128xf32>
    tpu.vector_store %arg5[%c0_5, %c0_6], %11 {strides = array<i32>} : memref<16x128xf32, #tpu.memory_space<vmem>>, vector<16x128xf32>,
    return
  }
  func.func @transform_0(%arg0: i32, %arg1: i32) -> (i32, i32) {
    %c0_i32 = arith.constant 0 : i32
    %c0_i32_0 = arith.constant 0 : i32
    return %arg0, %c0_i32 : i32, i32
  }
  func.func @transform_1(%arg0: i32, %arg1: i32) -> (i32, i32) {
    %c0_i32 = arith.constant 0 : i32
    return %arg0, %arg1 : i32, i32
  }
  func.func @transform_2(%arg0: i32, %arg1: i32) -> (i32, i32) {
    %c0_i32 = arith.constant 0 : i32
    return %arg0, %arg1 : i32, i32
  }
  func.func @transform_3(%arg0: i32, %arg1: i32) -> (i32, i32) {
    %c0_i32 = arith.constant 0 : i32
    return %arg0, %arg1 : i32, i32
  }
}

</mosaic_0001>

<llo_original>
// kernel: tpu_custom_call.1
$region0: #{tpu_custom_call.1}
  #allocation0 [shape = 'u32[]', space=smem, size = 0x4, offset = 0x4, fixed_abs, tag = 'smem constant byte address 0x4 - core index']
  #allocation1 [shape = 'u32[144,128]{1,0:T(1,128)}', space=vmem, size = 0x12000, scoped, tag = 'internal scratch']
  %s0 = inlined_call_operand.vmem [shape: f32[16,1], index: 0, kind: input, shape index: {}]
  %s1 = inlined_call_operand.vmem [shape: f32[16,128], index: 1, kind: input, shape index: {}]
  %s2 = inlined_call_operand.hbm [shape: f32[16,128], index: 2, kind: input, shape index: {}]
  %s3 = inlined_call_operand.hbm [shape: f32[16,128], index: 3, kind: output, shape index: {}]
  %s4 = sld [smem:[#allocation0]]
  $region26: #{tpu_custom_call.1} parent=0
    _
  %s6 = ssub.s32 1, %s4
  %s7 = scalar_select 0, %s6, %s4
  $region1: #{tpu_custom_call.1} parent=0
    #allocation2 [shape = 'u8[8192]{0}', space=vmem, size = 0x2000, scoped, tag = 'input window, operand 2, single buffered']
    #allocation3 [shape = 's32[1]{0}', space=sflag, size = 0x4, scoped, tag = 'scoped memory for tpu_custom_call.1']
    #allocation4 [shape = 's32[1]{0}', space=sflag, size = 0x4, scoped, tag = 'scoped memory for tpu_custom_call.1']
    #allocation5 [shape = 'u8[8192]{0}', space=vmem, size = 0x2000, scoped, tag = 'output window, operand 0, single buffered']
    %8 = vsyncpa [#allocation3], 0
    %9 = vsyncpa [#allocation4], 0
    // Predicated region
    $region2: #{tpu_custom_call.1} parent=1 // pred_check
      _
    $region3: #{tpu_custom_call.1} parent=1 // pred_check_branch
      %11 = sbr.rel (0) target = $region5
    $region4: #{tpu_custom_call.1} parent=1 // pred_region
      _
    $region5: #{tpu_custom_call.1} parent=1 // pred_fallthru
      _
    // Predicated region
    $region6: #{tpu_custom_call.1} parent=1 // pred_check
      _
    $region7: #{tpu_custom_call.1} parent=1 // pred_check_branch
      %13 = sbr.rel (0) target = $region9
    $region8: #{tpu_custom_call.1} parent=1 // pred_region
      _
    $region9: #{tpu_custom_call.1} parent=1 // pred_fallthru
      _
    // Predicated region
    $region10: #{tpu_custom_call.1} parent=1 // pred_check
      _
    $region11: #{tpu_custom_call.1} parent=1 // pred_check_branch
      %15 = sbr.rel (0) target = $region13
    $region12: #{tpu_custom_call.1} parent=1 // pred_region
      %s17 = ssub.s32 256, 256
      %18 = vsyncadd [#allocation3], %s17
      %s19 = sshll.u32 [#allocation2], 4
      %s20 = int_to_ptr.vmem [resolvable:$true] %s19
      %25 = dma.hbm_to_vmem [thread:$0]  %s2, 256, %s20, [#allocation3], 128, 128, 8
    $region13: #{tpu_custom_call.1} parent=1 // pred_fallthru
      _
    // Predicated region
    $region14: #{tpu_custom_call.1} parent=1 // pred_check
      _
    $region15: #{tpu_custom_call.1} parent=1 // pred_check_branch
      %27 = sbr.rel (0) target = $region17
    $region16: #{tpu_custom_call.1} parent=1 // pred_region
      %28 = dma.done [#allocation3], 256
    $region17: #{tpu_custom_call.1} parent=1 // pred_fallthru
      _
    %v29 = vld [vmem:[%s0] sm:$0xff]
    %v30 = vld [vmem:[%s0 + $0x8] sm:$0xff]
    %v31 = vrsqrt.pop %v29
    %v32 = vmul.f32 %v29, %v31
    %vm33 = vcmp.eq.f32.partialorder %v29, inf
    %v34 = vsel %vm33, %v29, %v32
    %vm35 = vcmp.eq.f32.partialorder %v29, 0.0
    %v36 = vand.u32 %v29, 2147483648
    %v37 = vsel %vm35, %v36, %v34
    %v38 = vrsqrt.pop %v30
    %v39 = vmul.f32 %v30, %v38
    %vm40 = vcmp.eq.f32.partialorder %v30, inf
    %v41 = vsel %vm40, %v30, %v39
    %vm42 = vcmp.eq.f32.partialorder %v30, 0.0
    %v43 = vand.u32 %v30, 2147483648
    %v44 = vsel %vm42, %v43, %v41
    %v45 = vsub.f32 1.0, %v29
    %v46 = vsub.f32 1.0, %v30
    %v47 = vrsqrt.pop %v45
    %v48 = vmul.f32 %v45, %v47
    %vm49 = vcmp.eq.f32.partialorder %v45, inf
    %v50 = vsel %vm49, %v45, %v48
    %vm51 = vcmp.eq.f32.partialorder %v45, 0.0
    %v52 = vand.u32 %v45, 2147483648
    %v53 = vsel %vm51, %v52, %v50
    %v54 = vrsqrt.pop %v46
    %v55 = vmul.f32 %v46, %v54
    %vm56 = vcmp.eq.f32.partialorder %v46, inf
    %v57 = vsel %vm56, %v46, %v55
    %vm58 = vcmp.eq.f32.partialorder %v46, 0.0
    %v59 = vand.u32 %v46, 2147483648
    %v60 = vsel %vm58, %v59, %v57
    %v61 = vld [vmem:[%s1] sm:$0xff]
    %v62 = vld [vmem:[%s1 + $0x8] sm:$0xff]
    %v63 = vld [vmem:[#allocation2] sm:$0xff]
    %v64 = vld [vmem:[#allocation2 + $0x8] sm:$0xff]
    %66 = vset.pattern.permute.xlu0 0
    %67 = vperm.xlu0 %66, %v37
    %v68 = vpop.permute.xlu0 %67
    %71 = vset.pattern.permute.xlu0 0
    %72 = vperm.xlu0 %71, %v44
    %v73 = vpop.permute.xlu0 %72
    %v75 = vmul.f32 %v68, %v61
    %v76 = vmul.f32 %v73, %v62
    %78 = vset.pattern.permute.xlu0 0
    %79 = vperm.xlu0 %78, %v53
    %v80 = vpop.permute.xlu0 %79
    %83 = vset.pattern.permute.xlu0 0
    %84 = vperm.xlu0 %83, %v60
    %v85 = vpop.permute.xlu0 %84
    %v87 = vmul.f32 %v80, %v63
    %v88 = vmul.f32 %v85, %v64
    %v89 = vadd.f32 %v75, %v87
    %v90 = vadd.f32 %v76, %v88
    %91 = vst [vmem:[#allocation5] sm:$0xff] %v89
    %92 = vst [vmem:[#allocation5 + $0x8] sm:$0xff] %v90
    // Predicated region
    $region18: #{tpu_custom_call.1} parent=1 // pred_check
      _
    $region19: #{tpu_custom_call.1} parent=1 // pred_check_branch
      %94 = sbr.rel (0) target = $region21
    $region20: #{tpu_custom_call.1} parent=1 // pred_region
      %s96 = ssub.s32 256, 256
      %97 = vsyncadd [#allocation4], %s96
      %s98 = sshll.u32 [#allocation5], 4
      %s99 = int_to_ptr.vmem [resolvable:$true] %s98
      %104 = dma.vmem_to_hbm [thread:$0]  %s99, 256, %s3, [#allocation4], 128, 128, 8
    $region21: #{tpu_custom_call.1} parent=1 // pred_fallthru
      _
    // Predicated region
    $region22: #{tpu_custom_call.1} parent=1 // pred_check
      _
    $region23: #{tpu_custom_call.1} parent=1 // pred_check_branch
      %106 = sbr.rel (0) target = $region25
    $region24: #{tpu_custom_call.1} parent=1 // pred_region
      %107 = dma.done [#allocation4], 256
    $region25: #{tpu_custom_call.1} parent=1 // pred_fallthru
      _
    %108 = vsyncpa [#allocation3], 1
    %109 = vsyncpa [#allocation4], 1

</llo_original>
